<compile_context>
chip_gen: v6e
topology: v6e:2x2x1
jax: 0.10.0
libtpu: 0.0.40
codegen_flags: <defaults>
</compile_context>

<pallas_src>
import functools
import math

import jax
import jax.numpy as jnp
import numpy as np
from jax import lax
from jax.experimental import pallas as pl
from jax.experimental.pallas import tpu as pltpu

NEG = -1e30          # "minus infinity" sentinel for padded sum_logdet lanes (f32-safe)
TINY = 1e-30         # clamp before log (only triggers for fully-padded rows)
LOG2 = math.log(2.0)


def _round_up(x, m):
    return ((x + m - 1) // m) * m


# ----------------------------------------------------------------------------
# Fused Pallas kernel: the whole BNAF stack (all MaskedLinear [+ Tanh] layers)
# ----------------------------------------------------------------------------
def bnaf_fused_kernel(x_ref, wt_ref, b_ref, et_ref, r_ref, y_ref, sld_ref,
                      *, layer_cfg, f_pad, matmul_dtype):
    tb = x_ref.shape[0]
    col = lax.broadcasted_iota(jnp.int32, (1, f_pad), 1)        # lane index

    h = x_ref[...].astype(jnp.float32)                           # (TB, F) activation
    sld = jnp.zeros((tb, f_pad), jnp.float32)                    # flat running logdets

    # Static unroll over layers; parameters stay resident in VMEM.
    for l, (n_in, n_out, apply_tanh) in enumerate(layer_cfg):
        wt = wt_ref[l]                                           # (F, F)  padded w^T
        et = et_ref[l]                                           # (F, F)  padded E^T
        bias = b_ref[l]                                          # (1, F)
        r = r_ref[l]                                             # (1, F)  rowmax(logdet)

        # ---- linear part on the MXU: y = h @ w^T + b  (pad lanes stay exactly 0)
        y = jnp.dot(h.astype(matmul_dtype), wt.astype(matmul_dtype),
                    preferred_element_type=jnp.float32) + bias

        # ---- block-wise logsumexp as an exp-matmul on the MXU
        m_b = jnp.max(sld, axis=-1, keepdims=True)               # (TB, 1)
        a = jnp.exp(sld - m_b)                                   # (TB, F), <= 1
        s = jnp.dot(a, et, preferred_element_type=jnp.float32)   # (TB, F)
        new_sld = m_b + r + jnp.log(jnp.maximum(s, TINY))
        new_sld = jnp.where(col < n_out, new_sld, NEG)           # keep pad lanes inert

        if apply_tanh:
            # tanh logdet: -2*(y - log2 + softplus(-2y));  pad lanes (y=0) add 0.
            z = -2.0 * y
            softplus = jnp.maximum(z, 0.0) + jnp.log1p(jnp.exp(-jnp.abs(z)))
            new_sld = new_sld + (-2.0) * (y - LOG2 + softplus)
            y = jnp.tanh(y)

        h = y
        sld = new_sld

    y_ref[...] = h.astype(y_ref.dtype)
    sld_ref[...] = sld.astype(sld_ref.dtype)


# ----------------------------------------------------------------------------
# Parameter-only glue: weight norm + masked exp-logdet matrices (plain JAX)
# ----------------------------------------------------------------------------
def _layer_precompute_padded(p, f_pad):
    weight, logg, bias = p["weight"], p["logg"], p["bias"]
    mask_d, mask_o = p["mask_d"], p["mask_o"]
    n_out, n_in = weight.shape

    v = jnp.exp(weight) * mask_d + weight * mask_o
    v_norm = jnp.sqrt(jnp.sum(v * v, axis=1, keepdims=True))
    w = jnp.exp(logg) * v / v_norm                               # (n_out, n_in)
    logdet = logg + weight - jnp.log(v_norm)                     # == -0.5*log(|v|^2)

    ld_masked = jnp.where(mask_d > 0, logdet, -jnp.inf)          # diag blocks only
    r = jnp.max(ld_masked, axis=1, keepdims=True)                # (n_out, 1), finite
    e = jnp.exp(ld_masked - r)                                   # zeros off-block, <=1

    wt_pad = jnp.zeros((f_pad, f_pad), jnp.float32).at[:n_in, :n_out].set(w.T)
    et_pad = jnp.zeros((f_pad, f_pad), jnp.float32).at[:n_in, :n_out].set(e.T)
    b_pad = jnp.zeros((1, f_pad), jnp.float32).at[0, :n_out].set(bias)
    r_pad = jnp.zeros((1, f_pad), jnp.float32).at[0, :n_out].set(r[:, 0])
    return wt_pad, et_pad, b_pad, r_pad


# ----------------------------------------------------------------------------
# Forward wrapper (jitted, single pallas_call for the whole flow)
# ----------------------------------------------------------------------------
@functools.partial(jax.jit, static_argnames=("uniform_target", "matmul_dtype"))
def bnaf_forward(x, layer_params, uniform_target=False, matmul_dtype=jnp.float32):
    """Equivalent of BlockNeuralAutoregressiveFlow.forward (use_batch_norm=False)."""
    B, data_dim = x.shape
    n_layers = len(layer_params)

    dims = [layer_params[0]["weight"].shape[1]] + \
           [p["weight"].shape[0] for p in layer_params]
    f_pad = _round_up(max(dims), 128)                            # lane-dense features

    tb = 256 if B >= 256 else _round_up(B, 8)                    # batch tile
    b_pad = _round_up(B, tb)

    pre = [_layer_precompute_padded(p, f_pad) for p in layer_params]
    wt_stack = jnp.stack([t[0] for t in pre])                    # (L, F, F)
    et_stack = jnp.stack([t[1] for t in pre])                    # (L, F, F)
    b_stack = jnp.stack([t[2] for t in pre])                     # (L, 1, F)
    r_stack = jnp.stack([t[3] for t in pre])                     # (L, 1, F)

    layer_cfg = tuple(
        (int(p["weight"].shape[1]), int(p["weight"].shape[0]),
         bool(uniform_target or (i < n_layers - 1)))
        for i, p in enumerate(layer_params))

    x_pad = jnp.zeros((b_pad, f_pad), jnp.float32).at[:B, :data_dim].set(x)

    kernel = functools.partial(bnaf_fused_kernel, layer_cfg=layer_cfg,
                               f_pad=f_pad, matmul_dtype=matmul_dtype)
    L = n_layers
    y_pad, sld_pad = pl.pallas_call(
        kernel,
        out_shape=(jax.ShapeDtypeStruct((b_pad, f_pad), jnp.float32),
                   jax.ShapeDtypeStruct((b_pad, f_pad), jnp.float32)),
        grid=(b_pad // tb,),
        in_specs=[
            pl.BlockSpec((tb, f_pad), lambda i: (i, 0)),             # x batch tile
            pl.BlockSpec((L, f_pad, f_pad), lambda i: (0, 0, 0)),    # stacked W^T
            pl.BlockSpec((L, 1, f_pad), lambda i: (0, 0, 0)),        # stacked bias
            pl.BlockSpec((L, f_pad, f_pad), lambda i: (0, 0, 0)),    # stacked E^T
            pl.BlockSpec((L, 1, f_pad), lambda i: (0, 0, 0)),        # stacked rowmax
        ],
        out_specs=(
            pl.BlockSpec((tb, f_pad), lambda i: (i, 0)),             # z
            pl.BlockSpec((tb, f_pad), lambda i: (i, 0)),             # sum_logdets
        ),
        compiler_params=pltpu.CompilerParams(
            dimension_semantics=("parallel",)),                      # megacore on v7x
    )(x_pad, wt_stack, b_stack, et_stack, r_stack)

    return y_pad[:B, :data_dim], sld_pad[:B, :data_dim]


# ----------------------------------------------------------------------------
# Parameter construction (deterministic, mirrors MaskedLinear.__init__ shapes)
# ----------------------------------------------------------------------------
def build_masks(in_f, out_f, data_dim):
    mask_d = np.zeros((out_f, in_f), np.float32)
    mask_o = np.zeros((out_f, in_f), np.float32)
    for i in range(data_dim):
        h = slice(i * out_f // data_dim, (i + 1) * out_f // data_dim)
        w = slice(i * in_f // data_dim, (i + 1) * in_f // data_dim)
        w_row = slice(0, (i + 1) * in_f // data_dim)
        mask_d[h, w] = 1.0
        mask_o[h, w_row] = 1.0
    mask_o = mask_o - mask_d
    return jnp.asarray(mask_d), jnp.asarray(mask_o)


def init_masked_linear(key, in_f, out_f, data_dim):
    k1, k2, k3 = jax.random.split(key, 3)
    bound = 1.0 / math.sqrt(in_f)
    weight = jax.random.uniform(k1, (out_f, in_f), jnp.float32, -bound, bound)
    logg = jnp.log(jax.random.uniform(k2, (out_f, 1), jnp.float32, 0.1, 1.0))
    bias = jax.random.uniform(k3, (out_f,), jnp.float32, -bound, bound)
    mask_d, mask_o = build_masks(in_f, out_f, data_dim)
    return dict(weight=weight, logg=logg, bias=bias,
                mask_d=mask_d, mask_o=mask_o)


# ----------------------------------------------------------------------------
# Pure-JAX reference that mirrors the PyTorch code line-by-line (for checking)
# ----------------------------------------------------------------------------
def bnaf_reference(x, layer_params, uniform_target=False):
    B = x.shape[0]
    data_dim = layer_params[0]["weight"].shape[1]
    sld = jnp.zeros((1, data_dim, 1, 1), jnp.float32)
    out = x
    n_layers = len(layer_params)
    for i, p in enumerate(layer_params):
        weight, logg, bias = p["weight"], p["logg"], p["bias"]
        mask_d, mask_o = p["mask_d"], p["mask_o"]
        out_f, in_f = weight.shape
        v = jnp.exp(weight) * mask_d + weight * mask_o
        v_norm = jnp.sqrt(jnp.sum(v * v, axis=1, keepdims=True))
        w = jnp.exp(logg) * v / v_norm
        new_out = out @ w.T + bias
        logdet = logg + weight - 0.5 * jnp.log(v_norm ** 2)
        logdet = logdet[np.asarray(mask_d, bool)]                 # boolean gather
        logdet = logdet.reshape(1, data_dim, out_f // data_dim, in_f // data_dim)
        logdet = jnp.broadcast_to(
            logdet, (B, data_dim, out_f // data_dim, in_f // data_dim))
        sld = jax.scipy.special.logsumexp(
            jnp.swapaxes(sld, 2, 3) + logdet, axis=-1, keepdims=True)
        out = new_out
        if uniform_target or (i < n_layers - 1):
            tanh_ld = -2.0 * (out - LOG2 + jax.nn.softplus(-2.0 * out))
            sld = sld + tanh_ld.reshape(sld.shape)
            out = jnp.tanh(out)
    return out, jnp.squeeze(sld)


# ----------------------------------------------------------------------------
if __name__ == "__main__":
    # Module config: BlockNeuralAutoregressiveFlow(data_dim=4, n_hidden=2,
    #                                              hidden_dim=32)
    data_dim, n_hidden, hidden_dim = 4, 2, 32
    batch = 2

    key = jax.random.PRNGKey(0)
    keys = jax.random.split(key, n_hidden + 3)

    # Layer stack: ML(D->H)+Tanh, [ML(H->H)+Tanh] * n_hidden, ML(H->D)
    layer_params = [init_masked_linear(keys[0], data_dim, hidden_dim, data_dim)]
    for j in range(n_hidden):
        layer_params.append(
            init_masked_linear(keys[1 + j], hidden_dim, hidden_dim, data_dim))
    layer_params.append(
        init_masked_linear(keys[n_hidden + 1], hidden_dim, data_dim, data_dim))
    # TODO(synk): use_batch_norm=True (nn.BatchNorm1d) branch not implemented;
    # the default use_batch_norm=False path is what is reproduced here.
    # NOTE: on v6e/v7x at large batch, pass matmul_dtype=jnp.bfloat16 to
    # bnaf_forward to run the linear matmuls at MXU-native bf16 (f32 accumulate);
    # the logdet / logsumexp path always stays f32.

    x = jax.random.normal(keys[n_hidden + 2], (batch, data_dim), jnp.float32)

    z, sum_logdets = bnaf_forward(x, layer_params)
    jax.block_until_ready((z, sum_logdets))

    z_ref, sld_ref = bnaf_reference(x, layer_params)
    np.testing.assert_allclose(np.asarray(z), np.asarray(z_ref),
                               rtol=1e-4, atol=1e-4)
    np.testing.assert_allclose(np.asarray(sum_logdets), np.asarray(sld_ref),
                               rtol=1e-4, atol=1e-4)

    assert z.shape == (batch, data_dim)
    assert sum_logdets.shape == (batch, data_dim)
    print("KERNEL_OK")
</pallas_src>

<mosaic_0001>
module attributes {stable_mosaic.version = 11 : i64} {
  func.func @bnaf_fused_kernel(%arg0: i32, %arg1: memref<8x128xf32, #tpu.memory_space<vmem>>, %arg2: memref<4x128x128xf32, #tpu.memory_space<vmem>>, %arg3: memref<4x1x128xf32, #tpu.memory_space<vmem>>, %arg4: memref<4x128x128xf32, #tpu.memory_space<vmem>>, %arg5: memref<4x1x128xf32, #tpu.memory_space<vmem>>, %arg6: memref<8x128xf32, #tpu.memory_space<vmem>>, %arg7: memref<8x128xf32, #tpu.memory_space<vmem>>) attributes {dimension_semantics = [#tpu.dimension_semantics<parallel>], iteration_bounds = array<i64: 1>, scalar_prefetch = 0 : i64, scratch_operands = 0 : i64, tpu.core_type = #tpu.core_type<tc>, window_params = [{transform_indices = @transform_0, window_bounds = array<i64: 8, 128>}, {pipeline_mode = #tpu.pipeline_mode<synchronous>, transform_indices = @transform_1, window_bounds = array<i64: 4, 128, 128>}, {pipeline_mode = #tpu.pipeline_mode<synchronous>, transform_indices = @transform_2, window_bounds = array<i64: 4, 1, 128>}, {pipeline_mode = #tpu.pipeline_mode<synchronous>, transform_indices = @transform_3, window_bounds = array<i64: 4, 128, 128>}, {pipeline_mode = #tpu.pipeline_mode<synchronous>, transform_indices = @transform_4, window_bounds = array<i64: 4, 1, 128>}, {transform_indices = @transform_5, window_bounds = array<i64: 8, 128>}, {transform_indices = @transform_6, window_bounds = array<i64: 8, 128>}]} {
    %0 = tpu.iota {dimensions = array<i32: 1>} : vector<1x128xi32>
    %c0 = arith.constant 0 : index
    %c0_0 = arith.constant 0 : index
    %1 = vector.load %arg1[%c0, %c0_0] : memref<8x128xf32, #tpu.memory_space<vmem>>, vector<8x128xf32>
    %cst = arith.constant 0.000000e+00 : f32
    %2 = vector.broadcast %cst : f32 to vector<8x128xf32>
    %c0_1 = arith.constant 0 : index
    %c0_2 = arith.constant 0 : index
    %c0_3 = arith.constant 0 : index
    %3 = vector.load %arg2[%c0_1, %c0_2, %c0_3] : memref<4x128x128xf32, #tpu.memory_space<vmem>>, vector<1x128x128xf32>
    %4 = vector.shape_cast %3 : vector<1x128x128xf32> to vector<128x128xf32>
    %c0_4 = arith.constant 0 : index
    %c0_5 = arith.constant 0 : index
    %c0_6 = arith.constant 0 : index
    %5 = vector.load %arg4[%c0_4, %c0_5, %c0_6] : memref<4x128x128xf32, #tpu.memory_space<vmem>>, vector<1x128x128xf32>
    %6 = vector.shape_cast %5 : vector<1x128x128xf32> to vector<128x128xf32>
    %c0_7 = arith.constant 0 : index
    %c0_8 = arith.constant 0 : index
    %c0_9 = arith.constant 0 : index
    %7 = vector.load %arg3[%c0_7, %c0_8, %c0_9] : memref<4x1x128xf32, #tpu.memory_space<vmem>>, vector<1x1x128xf32>
    %8 = vector.shape_cast %7 : vector<1x1x128xf32> to vector<1x128xf32>
    %c0_10 = arith.constant 0 : index
    %c0_11 = arith.constant 0 : index
    %c0_12 = arith.constant 0 : index
    %9 = vector.load %arg5[%c0_10, %c0_11, %c0_12] : memref<4x1x128xf32, #tpu.memory_space<vmem>>, vector<1x1x128xf32>
    %10 = vector.shape_cast %9 : vector<1x1x128xf32> to vector<1x128xf32>
    %cst_13 = arith.constant dense<0.000000e+00> : vector<8x128xf32>
    %11 = tpu.matmul %1, %4, %cst_13 {dimension_numbers = #tpu.dot_dimension_numbers<[1], [0], [0], [1], [0, 0, 1, 1], [], []>} : vector<8x128xf32>, vector<128x128xf32>, vector<8x128xf32> -> vector<8x128xf32>
    %12 = vector.broadcast %8 : vector<1x128xf32> to vector<8x128xf32>
    %13 = arith.addf %11, %12 : vector<8x128xf32>
    %cst_14 = arith.constant dense<0xFF800000> : vector<8xf32>
    %14 = vector.multi_reduction <maximumf>, %2, %cst_14 [1] : vector<8x128xf32> to vector<8xf32>
    %15 = vector.shape_cast %14 : vector<8xf32> to vector<8x1xf32>
    %16 = vector.broadcast %15 : vector<8x1xf32> to vector<8x128xf32>
    %17 = arith.subf %2, %16 : vector<8x128xf32>
    %18 = math.exp %17 : vector<8x128xf32>
    %cst_15 = arith.constant dense<0.000000e+00> : vector<8x128xf32>
    %19 = tpu.matmul %18, %6, %cst_15 {dimension_numbers = #tpu.dot_dimension_numbers<[1], [0], [0], [1], [0, 0, 1, 1], [], []>} : vector<8x128xf32>, vector<128x128xf32>, vector<8x128xf32> -> vector<8x128xf32>
    %20 = vector.broadcast %15 : vector<8x1xf32> to vector<8x128xf32>
    %21 = vector.broadcast %10 : vector<1x128xf32> to vector<8x128xf32>
    %22 = arith.addf %20, %21 : vector<8x128xf32>
    %cst_16 = arith.constant 1.000000e-30 : f32
    %23 = vector.broadcast %cst_16 : f32 to vector<8x128xf32>
    %24 = arith.maximumf %19, %23 : vector<8x128xf32>
    %25 = math.log %24 : vector<8x128xf32>
    %26 = arith.addf %22, %25 : vector<8x128xf32>
    %c32_i32 = arith.constant 32 : i32
    %27 = vector.broadcast %c32_i32 : i32 to vector<1x128xi32>
    %28 = arith.cmpi slt, %0, %27 : vector<1x128xi32>
    %cst_17 = arith.constant -1.000000e+30 : f32
    %29 = vector.shape_cast %28 : vector<1x128xi1> to vector<1x128xi1>
    %30 = vector.broadcast %29 : vector<1x128xi1> to vector<8x128xi1>
    %31 = vector.broadcast %cst_17 : f32 to vector<8x128xf32>
    %32 = arith.select %30, %26, %31 : vector<8x128xi1>, vector<8x128xf32>
    %cst_18 = arith.constant -2.000000e+00 : f32
    %33 = vector.broadcast %cst_18 : f32 to vector<8x128xf32>
    %34 = arith.mulf %33, %13 : vector<8x128xf32>
    %cst_19 = arith.constant 0.000000e+00 : f32
    %35 = vector.broadcast %cst_19 : f32 to vector<8x128xf32>
    %36 = arith.maximumf %34, %35 : vector<8x128xf32>
    %37 = math.absf %34 : vector<8x128xf32>
    %cst_20 = arith.constant 0.000000e+00 : f32
    %38 = vector.broadcast %cst_20 : f32 to vector<8x128xf32>
    %39 = arith.subf %38, %37 : vector<8x128xf32>
    %40 = math.exp %39 : vector<8x128xf32>
    %41 = math.log1p %40 : vector<8x128xf32>
    %42 = arith.addf %36, %41 : vector<8x128xf32>
    %cst_21 = arith.constant 0.693147182 : f32
    %43 = vector.broadcast %cst_21 : f32 to vector<8x128xf32>
    %44 = arith.subf %13, %43 : vector<8x128xf32>
    %45 = arith.addf %44, %42 : vector<8x128xf32>
    %cst_22 = arith.constant -2.000000e+00 : f32
    %46 = vector.broadcast %cst_22 : f32 to vector<8x128xf32>
    %47 = arith.mulf %46, %45 : vector<8x128xf32>
    %48 = arith.addf %32, %47 : vector<8x128xf32>
    %49 = math.tanh %13 : vector<8x128xf32>
    %c1 = arith.constant 1 : index
    %c0_23 = arith.constant 0 : index
    %c0_24 = arith.constant 0 : index
    %50 = vector.load %arg2[%c1, %c0_23, %c0_24] : memref<4x128x128xf32, #tpu.memory_space<vmem>>, vector<1x128x128xf32>
    %51 = vector.shape_cast %50 : vector<1x128x128xf32> to vector<128x128xf32>
    %c1_25 = arith.constant 1 : index
    %c0_26 = arith.constant 0 : index
    %c0_27 = arith.constant 0 : index
    %52 = vector.load %arg4[%c1_25, %c0_26, %c0_27] : memref<4x128x128xf32, #tpu.memory_space<vmem>>, vector<1x128x128xf32>
    %53 = vector.shape_cast %52 : vector<1x128x128xf32> to vector<128x128xf32>
    %c1_28 = arith.constant 1 : index
    %c0_29 = arith.constant 0 : index
    %c0_30 = arith.constant 0 : index
    %54 = vector.load %arg3[%c1_28, %c0_29, %c0_30] : memref<4x1x128xf32, #tpu.memory_space<vmem>>, vector<1x1x128xf32>
    %55 = vector.shape_cast %54 : vector<1x1x128xf32> to vector<1x128xf32>
    %c1_31 = arith.constant 1 : index
    %c0_32 = arith.constant 0 : index
    %c0_33 = arith.constant 0 : index
    %56 = vector.load %arg5[%c1_31, %c0_32, %c0_33] : memref<4x1x128xf32, #tpu.memory_space<vmem>>, vector<1x1x128xf32>
    %57 = vector.shape_cast %56 : vector<1x1x128xf32> to vector<1x128xf32>
    %cst_34 = arith.constant dense<0.000000e+00> : vector<8x128xf32>
    %58 = tpu.matmul %49, %51, %cst_34 {dimension_numbers = #tpu.dot_dimension_numbers<[1], [0], [0], [1], [0, 0, 1, 1], [], []>} : vector<8x128xf32>, vector<128x128xf32>, vector<8x128xf32> -> vector<8x128xf32>
    %59 = vector.broadcast %55 : vector<1x128xf32> to vector<8x128xf32>
    %60 = arith.addf %58, %59 : vector<8x128xf32>
    %cst_35 = arith.constant dense<0xFF800000> : vector<8xf32>
    %61 = vector.multi_reduction <maximumf>, %48, %cst_35 [1] : vector<8x128xf32> to vector<8xf32>
    %62 = vector.shape_cast %61 : vector<8xf32> to vector<8x1xf32>
    %63 = vector.broadcast %62 : vector<8x1xf32> to vector<8x128xf32>
    %64 = arith.subf %48, %63 : vector<8x128xf32>
    %65 = math.exp %64 : vector<8x128xf32>
    %cst_36 = arith.constant dense<0.000000e+00> : vector<8x128xf32>
    %66 = tpu.matmul %65, %53, %cst_36 {dimension_numbers = #tpu.dot_dimension_numbers<[1], [0], [0], [1], [0, 0, 1, 1], [], []>} : vector<8x128xf32>, vector<128x128xf32>, vector<8x128xf32> -> vector<8x128xf32>
    %67 = vector.broadcast %62 : vector<8x1xf32> to vector<8x128xf32>
    %68 = vector.broadcast %57 : vector<1x128xf32> to vector<8x128xf32>
    %69 = arith.addf %67, %68 : vector<8x128xf32>
    %cst_37 = arith.constant 1.000000e-30 : f32
    %70 = vector.broadcast %cst_37 : f32 to vector<8x128xf32>
    %71 = arith.maximumf %66, %70 : vector<8x128xf32>
    %72 = math.log %71 : vector<8x128xf32>
    %73 = arith.addf %69, %72 : vector<8x128xf32>
    %c32_i32_38 = arith.constant 32 : i32
    %74 = vector.broadcast %c32_i32_38 : i32 to vector<1x128xi32>
    %75 = arith.cmpi slt, %0, %74 : vector<1x128xi32>
    %cst_39 = arith.constant -1.000000e+30 : f32
    %76 = vector.shape_cast %75 : vector<1x128xi1> to vector<1x128xi1>
    %77 = vector.broadcast %76 : vector<1x128xi1> to vector<8x128xi1>
    %78 = vector.broadcast %cst_39 : f32 to vector<8x128xf32>
    %79 = arith.select %77, %73, %78 : vector<8x128xi1>, vector<8x128xf32>
    %cst_40 = arith.constant -2.000000e+00 : f32
    %80 = vector.broadcast %cst_40 : f32 to vector<8x128xf32>
    %81 = arith.mulf %80, %60 : vector<8x128xf32>
    %cst_41 = arith.constant 0.000000e+00 : f32
    %82 = vector.broadcast %cst_41 : f32 to vector<8x128xf32>
    %83 = arith.maximumf %81, %82 : vector<8x128xf32>
    %84 = math.absf %81 : vector<8x128xf32>
    %cst_42 = arith.constant 0.000000e+00 : f32
    %85 = vector.broadcast %cst_42 : f32 to vector<8x128xf32>
    %86 = arith.subf %85, %84 : vector<8x128xf32>
    %87 = math.exp %86 : vector<8x128xf32>
    %88 = math.log1p %87 : vector<8x128xf32>
    %89 = arith.addf %83, %88 : vector<8x128xf32>
    %cst_43 = arith.constant 0.693147182 : f32
    %90 = vector.broadcast %cst_43 : f32 to vector<8x128xf32>
    %91 = arith.subf %60, %90 : vector<8x128xf32>
    %92 = arith.addf %91, %89 : vector<8x128xf32>
    %cst_44 = arith.constant -2.000000e+00 : f32
    %93 = vector.broadcast %cst_44 : f32 to vector<8x128xf32>
    %94 = arith.mulf %93, %92 : vector<8x128xf32>
    %95 = arith.addf %79, %94 : vector<8x128xf32>
    %96 = math.tanh %60 : vector<8x128xf32>
    %c2 = arith.constant 2 : index
    %c0_45 = arith.constant 0 : index
    %c0_46 = arith.constant 0 : index
    %97 = vector.load %arg2[%c2, %c0_45, %c0_46] : memref<4x128x128xf32, #tpu.memory_space<vmem>>, vector<1x128x128xf32>
    %98 = vector.shape_cast %97 : vector<1x128x128xf32> to vector<128x128xf32>
    %c2_47 = arith.constant 2 : index
    %c0_48 = arith.constant 0 : index
    %c0_49 = arith.constant 0 : index
    %99 = vector.load %arg4[%c2_47, %c0_48, %c0_49] : memref<4x128x128xf32, #tpu.memory_space<vmem>>, vector<1x128x128xf32>
    %100 = vector.shape_cast %99 : vector<1x128x128xf32> to vector<128x128xf32>
    %c2_50 = arith.constant 2 : index
    %c0_51 = arith.constant 0 : index
    %c0_52 = arith.constant 0 : index
    %101 = vector.load %arg3[%c2_50, %c0_51, %c0_52] : memref<4x1x128xf32, #tpu.memory_space<vmem>>, vector<1x1x128xf32>
    %102 = vector.shape_cast %101 : vector<1x1x128xf32> to vector<1x128xf32>
    %c2_53 = arith.constant 2 : index
    %c0_54 = arith.constant 0 : index
    %c0_55 = arith.constant 0 : index
    %103 = vector.load %arg5[%c2_53, %c0_54, %c0_55] : memref<4x1x128xf32, #tpu.memory_space<vmem>>, vector<1x1x128xf32>
    %104 = vector.shape_cast %103 : vector<1x1x128xf32> to vector<1x128xf32>
    %cst_56 = arith.constant dense<0.000000e+00> : vector<8x128xf32>
    %105 = tpu.matmul %96, %98, %cst_56 {dimension_numbers = #tpu.dot_dimension_numbers<[1], [0], [0], [1], [0, 0, 1, 1], [], []>} : vector<8x128xf32>, vector<128x128xf32>, vector<8x128xf32> -> vector<8x128xf32>
    %106 = vector.broadcast %102 : vector<1x128xf32> to vector<8x128xf32>
    %107 = arith.addf %105, %106 : vector<8x128xf32>
    %cst_57 = arith.constant dense<0xFF800000> : vector<8xf32>
    %108 = vector.multi_reduction <maximumf>, %95, %cst_57 [1] : vector<8x128xf32> to vector<8xf32>
    %109 = vector.shape_cast %108 : vector<8xf32> to vector<8x1xf32>
    %110 = vector.broadcast %109 : vector<8x1xf32> to vector<8x128xf32>
    %111 = arith.subf %95, %110 : vector<8x128xf32>
    %112 = math.exp %111 : vector<8x128xf32>
    %cst_58 = arith.constant dense<0.000000e+00> : vector<8x128xf32>
    %113 = tpu.matmul %112, %100, %cst_58 {dimension_numbers = #tpu.dot_dimension_numbers<[1], [0], [0], [1], [0, 0, 1, 1], [], []>} : vector<8x128xf32>, vector<128x128xf32>, vector<8x128xf32> -> vector<8x128xf32>
    %114 = vector.broadcast %109 : vector<8x1xf32> to vector<8x128xf32>
    %115 = vector.broadcast %104 : vector<1x128xf32> to vector<8x128xf32>
    %116 = arith.addf %114, %115 : vector<8x128xf32>
    %cst_59 = arith.constant 1.000000e-30 : f32
    %117 = vector.broadcast %cst_59 : f32 to vector<8x128xf32>
    %118 = arith.maximumf %113, %117 : vector<8x128xf32>
    %119 = math.log %118 : vector<8x128xf32>
    %120 = arith.addf %116, %119 : vector<8x128xf32>
    %c32_i32_60 = arith.constant 32 : i32
    %121 = vector.broadcast %c32_i32_60 : i32 to vector<1x128xi32>
    %122 = arith.cmpi slt, %0, %121 : vector<1x128xi32>
    %cst_61 = arith.constant -1.000000e+30 : f32
    %123 = vector.shape_cast %122 : vector<1x128xi1> to vector<1x128xi1>
    %124 = vector.broadcast %123 : vector<1x128xi1> to vector<8x128xi1>
    %125 = vector.broadcast %cst_61 : f32 to vector<8x128xf32>
    %126 = arith.select %124, %120, %125 : vector<8x128xi1>, vector<8x128xf32>
    %cst_62 = arith.constant -2.000000e+00 : f32
    %127 = vector.broadcast %cst_62 : f32 to vector<8x128xf32>
    %128 = arith.mulf %127, %107 : vector<8x128xf32>
    %cst_63 = arith.constant 0.000000e+00 : f32
    %129 = vector.broadcast %cst_63 : f32 to vector<8x128xf32>
    %130 = arith.maximumf %128, %129 : vector<8x128xf32>
    %131 = math.absf %128 : vector<8x128xf32>
    %cst_64 = arith.constant 0.000000e+00 : f32
    %132 = vector.broadcast %cst_64 : f32 to vector<8x128xf32>
    %133 = arith.subf %132, %131 : vector<8x128xf32>
    %134 = math.exp %133 : vector<8x128xf32>
    %135 = math.log1p %134 : vector<8x128xf32>
    %136 = arith.addf %130, %135 : vector<8x128xf32>
    %cst_65 = arith.constant 0.693147182 : f32
    %137 = vector.broadcast %cst_65 : f32 to vector<8x128xf32>
    %138 = arith.subf %107, %137 : vector<8x128xf32>
    %139 = arith.addf %138, %136 : vector<8x128xf32>
    %cst_66 = arith.constant -2.000000e+00 : f32
    %140 = vector.broadcast %cst_66 : f32 to vector<8x128xf32>
    %141 = arith.mulf %140, %139 : vector<8x128xf32>
    %142 = arith.addf %126, %141 : vector<8x128xf32>
    %143 = math.tanh %107 : vector<8x128xf32>
    %c3 = arith.constant 3 : index
    %c0_67 = arith.constant 0 : index
    %c0_68 = arith.constant 0 : index
    %144 = vector.load %arg2[%c3, %c0_67, %c0_68] : memref<4x128x128xf32, #tpu.memory_space<vmem>>, vector<1x128x128xf32>
    %145 = vector.shape_cast %144 : vector<1x128x128xf32> to vector<128x128xf32>
    %c3_69 = arith.constant 3 : index
    %c0_70 = arith.constant 0 : index
    %c0_71 = arith.constant 0 : index
    %146 = vector.load %arg4[%c3_69, %c0_70, %c0_71] : memref<4x128x128xf32, #tpu.memory_space<vmem>>, vector<1x128x128xf32>
    %147 = vector.shape_cast %146 : vector<1x128x128xf32> to vector<128x128xf32>
    %c3_72 = arith.constant 3 : index
    %c0_73 = arith.constant 0 : index
    %c0_74 = arith.constant 0 : index
    %148 = vector.load %arg3[%c3_72, %c0_73, %c0_74] : memref<4x1x128xf32, #tpu.memory_space<vmem>>, vector<1x1x128xf32>
    %149 = vector.shape_cast %148 : vector<1x1x128xf32> to vector<1x128xf32>
    %c3_75 = arith.constant 3 : index
    %c0_76 = arith.constant 0 : index
    %c0_77 = arith.constant 0 : index
    %150 = vector.load %arg5[%c3_75, %c0_76, %c0_77] : memref<4x1x128xf32, #tpu.memory_space<vmem>>, vector<1x1x128xf32>
    %151 = vector.shape_cast %150 : vector<1x1x128xf32> to vector<1x128xf32>
    %cst_78 = arith.constant dense<0.000000e+00> : vector<8x128xf32>
    %152 = tpu.matmul %143, %145, %cst_78 {dimension_numbers = #tpu.dot_dimension_numbers<[1], [0], [0], [1], [0, 0, 1, 1], [], []>} : vector<8x128xf32>, vector<128x128xf32>, vector<8x128xf32> -> vector<8x128xf32>
    %153 = vector.broadcast %149 : vector<1x128xf32> to vector<8x128xf32>
    %154 = arith.addf %152, %153 : vector<8x128xf32>
    %cst_79 = arith.constant dense<0xFF800000> : vector<8xf32>
    %155 = vector.multi_reduction <maximumf>, %142, %cst_79 [1] : vector<8x128xf32> to vector<8xf32>
    %156 = vector.shape_cast %155 : vector<8xf32> to vector<8x1xf32>
    %157 = vector.broadcast %156 : vector<8x1xf32> to vector<8x128xf32>
    %158 = arith.subf %142, %157 : vector<8x128xf32>
    %159 = math.exp %158 : vector<8x128xf32>
    %cst_80 = arith.constant dense<0.000000e+00> : vector<8x128xf32>
    %160 = tpu.matmul %159, %147, %cst_80 {dimension_numbers = #tpu.dot_dimension_numbers<[1], [0], [0], [1], [0, 0, 1, 1], [], []>} : vector<8x128xf32>, vector<128x128xf32>, vector<8x128xf32> -> vector<8x128xf32>
    %161 = vector.broadcast %156 : vector<8x1xf32> to vector<8x128xf32>
    %162 = vector.broadcast %151 : vector<1x128xf32> to vector<8x128xf32>
    %163 = arith.addf %161, %162 : vector<8x128xf32>
    %cst_81 = arith.constant 1.000000e-30 : f32
    %164 = vector.broadcast %cst_81 : f32 to vector<8x128xf32>
    %165 = arith.maximumf %160, %164 : vector<8x128xf32>
    %166 = math.log %165 : vector<8x128xf32>
    %167 = arith.addf %163, %166 : vector<8x128xf32>
    %c4_i32 = arith.constant 4 : i32
    %168 = vector.broadcast %c4_i32 : i32 to vector<1x128xi32>
    %169 = arith.cmpi slt, %0, %168 : vector<1x128xi32>
    %cst_82 = arith.constant -1.000000e+30 : f32
    %170 = vector.shape_cast %169 : vector<1x128xi1> to vector<1x128xi1>
    %171 = vector.broadcast %170 : vector<1x128xi1> to vector<8x128xi1>
    %172 = vector.broadcast %cst_82 : f32 to vector<8x128xf32>
    %173 = arith.select %171, %167, %172 : vector<8x128xi1>, vector<8x128xf32>
    %c0_83 = arith.constant 0 : index
    %c0_84 = arith.constant 0 : index
    %174 = vector.load %arg6[%c0_83, %c0_84] : memref<8x128xf32, #tpu.memory_space<vmem>>, vector<8x128xf32>
    tpu.vector_store %arg6[%c0_83, %c0_84], %154 {strides = array<i32>} : memref<8x128xf32, #tpu.memory_space<vmem>>, vector<8x128xf32>,
    %c0_85 = arith.constant 0 : index
    %c0_86 = arith.constant 0 : index
    %175 = vector.load %arg7[%c0_85, %c0_86] : memref<8x128xf32, #tpu.memory_space<vmem>>, vector<8x128xf32>
    tpu.vector_store %arg7[%c0_85, %c0_86], %173 {strides = array<i32>} : memref<8x128xf32, #tpu.memory_space<vmem>>, vector<8x128xf32>,
    return
  }
  func.func @transform_0(%arg0: i32) -> (i32, i32) {
    %c0_i32 = arith.constant 0 : i32
    %c0_i32_0 = arith.constant 0 : i32
    return %arg0, %c0_i32 : i32, i32
  }
  func.func @transform_1(%arg0: i32) -> (i32, i32, i32) {
    %c0_i32 = arith.constant 0 : i32
    %c0_i32_0 = arith.constant 0 : i32
    %c0_i32_1 = arith.constant 0 : i32
    %c0_i32_2 = arith.constant 0 : i32
    return %c0_i32, %c0_i32_0, %c0_i32_1 : i32, i32, i32
  }
  func.func @transform_2(%arg0: i32) -> (i32, i32, i32) {
    %c0_i32 = arith.constant 0 : i32
    %c0_i32_0 = arith.constant 0 : i32
    %c0_i32_1 = arith.constant 0 : i32
    %c0_i32_2 = arith.constant 0 : i32
    return %c0_i32, %c0_i32_0, %c0_i32_1 : i32, i32, i32
  }
  func.func @transform_3(%arg0: i32) -> (i32, i32, i32) {
    %c0_i32 = arith.constant 0 : i32
    %c0_i32_0 = arith.constant 0 : i32
    %c0_i32_1 = arith.constant 0 : i32
    %c0_i32_2 = arith.constant 0 : i32
    return %c0_i32, %c0_i32_0, %c0_i32_1 : i32, i32, i32
  }
  func.func @transform_4(%arg0: i32) -> (i32, i32, i32) {
    %c0_i32 = arith.constant 0 : i32
    %c0_i32_0 = arith.constant 0 : i32
    %c0_i32_1 = arith.constant 0 : i32
    %c0_i32_2 = arith.constant 0 : i32
    return %c0_i32, %c0_i32_0, %c0_i32_1 : i32, i32, i32
  }
  func.func @transform_5(%arg0: i32) -> (i32, i32) {
    %c0_i32 = arith.constant 0 : i32
    %c0_i32_0 = arith.constant 0 : i32
    return %arg0, %c0_i32 : i32, i32
  }
  func.func @transform_6(%arg0: i32) -> (i32, i32) {
    %c0_i32 = arith.constant 0 : i32
    %c0_i32_0 = arith.constant 0 : i32
    return %arg0, %c0_i32 : i32, i32
  }
}

</mosaic_0001>

<llo_original>
// kernel: bnaf_forward.1
$region0: #{bnaf_forward.1}
  #allocation0 [shape = 'u32[]', space=smem, size = 0x4, offset = 0x4, fixed_abs, tag = 'smem constant byte address 0x4 - core index']
  #allocation1 [shape = 'u32[144,128]{1,0:T(1,128)}', space=vmem, size = 0x12000, scoped, tag = 'internal scratch']
  %s0 = inlined_call_operand.vmem [shape: f32[8,128], index: 0, kind: input, shape index: {}]
  %s1 = inlined_call_operand.vmem [shape: f32[4,128,128], index: 1, kind: input, shape index: {}]
  %s2 = inlined_call_operand.vmem [shape: f32[4,1,128], index: 2, kind: input, shape index: {}]
  %s3 = inlined_call_operand.vmem [shape: f32[4,128,128], index: 3, kind: input, shape index: {}]
  %s4 = inlined_call_operand.vmem [shape: f32[4,1,128], index: 4, kind: input, shape index: {}]
  %s5 = inlined_call_operand.vmem [shape: f32[8,128], index: 5, kind: output, shape index: {0}]
  %s6 = inlined_call_operand.vmem [shape: f32[8,128], index: 6, kind: output, shape index: {1}]
  %7 = xla_tuple %s5, %s6
  %s8 = sld [smem:[#allocation0]]
  $region38: #{bnaf_forward.1} parent=0
    _
  %s10 = ssub.s32 1, %s8
  %s11 = scalar_select 0, %s10, %s8
  // Predicated region
  $region2: #{bnaf_forward.1} parent=0 // pred_check
    _
  $region3: #{bnaf_forward.1} parent=0 // pred_check_branch
    %13 = sbr.rel (0) target = $region5
  $region4: #{bnaf_forward.1} parent=0 // pred_region
    _
  $region5: #{bnaf_forward.1} parent=0 // pred_fallthru
    _
  // Predicated region
  $region6: #{bnaf_forward.1} parent=0 // pred_check
    _
  $region7: #{bnaf_forward.1} parent=0 // pred_check_branch
    %15 = sbr.rel (0) target = $region9
  $region8: #{bnaf_forward.1} parent=0 // pred_region
    _
  $region9: #{bnaf_forward.1} parent=0 // pred_fallthru
    _
  // Predicated region
  $region10: #{bnaf_forward.1} parent=0 // pred_check
    _
  $region11: #{bnaf_forward.1} parent=0 // pred_check_branch
    %17 = sbr.rel (0) target = $region13
  $region12: #{bnaf_forward.1} parent=0 // pred_region
    _
  $region13: #{bnaf_forward.1} parent=0 // pred_fallthru
    _
  // Predicated region
  $region14: #{bnaf_forward.1} parent=0 // pred_check
    _
  $region15: #{bnaf_forward.1} parent=0 // pred_check_branch
    %19 = sbr.rel (0) target = $region17
  $region16: #{bnaf_forward.1} parent=0 // pred_region
    _
  $region17: #{bnaf_forward.1} parent=0 // pred_fallthru
    _
  // Predicated region
  $region18: #{bnaf_forward.1} parent=0 // pred_check
    _
  $region19: #{bnaf_forward.1} parent=0 // pred_check_branch
    %21 = sbr.rel (0) target = $region21
  $region20: #{bnaf_forward.1} parent=0 // pred_region
    _
  $region21: #{bnaf_forward.1} parent=0 // pred_fallthru
    _
  %v22 = vlaneseq
  %v23 = vand.u32 %v22, 127
  %v24 = vld [vmem:[%s0] sm:$0xff]
  %v25 = vld [vmem:[%s1] sm:$0xff]
  %v26 = vld [vmem:[%s1 + $0x8] sm:$0xff]
  %v27 = vld [vmem:[%s1 + $0x10] sm:$0xff]
  %v28 = vld [vmem:[%s1 + $0x18] sm:$0xff]
  %v29 = vld [vmem:[%s1 + $0x20] sm:$0xff]
  %v30 = vld [vmem:[%s1 + $0x28] sm:$0xff]
  %v31 = vld [vmem:[%s1 + $0x30] sm:$0xff]
  %v32 = vld [vmem:[%s1 + $0x38] sm:$0xff]
  %v33 = vld [vmem:[%s1 + $0x40] sm:$0xff]
  %v34 = vld [vmem:[%s1 + $0x48] sm:$0xff]
  %v35 = vld [vmem:[%s1 + $0x50] sm:$0xff]
  %v36 = vld [vmem:[%s1 + $0x58] sm:$0xff]
  %v37 = vld [vmem:[%s1 + $0x60] sm:$0xff]
  %v38 = vld [vmem:[%s1 + $0x68] sm:$0xff]
  %v39 = vld [vmem:[%s1 + $0x70] sm:$0xff]
  %v40 = vld [vmem:[%s1 + $0x78] sm:$0xff]
  %v41 = vld [vmem:[%s3] sm:$0xff]
  %v42 = vld [vmem:[%s3 + $0x8] sm:$0xff]
  %v43 = vld [vmem:[%s3 + $0x10] sm:$0xff]
  %v44 = vld [vmem:[%s3 + $0x18] sm:$0xff]
  %v45 = vld [vmem:[%s3 + $0x20] sm:$0xff]
  %v46 = vld [vmem:[%s3 + $0x28] sm:$0xff]
  %v47 = vld [vmem:[%s3 + $0x30] sm:$0xff]
  %v48 = vld [vmem:[%s3 + $0x38] sm:$0xff]
  %v49 = vld [vmem:[%s3 + $0x40] sm:$0xff]
  %v50 = vld [vmem:[%s3 + $0x48] sm:$0xff]
  %v51 = vld [vmem:[%s3 + $0x50] sm:$0xff]
  %v52 = vld [vmem:[%s3 + $0x58] sm:$0xff]
  %v53 = vld [vmem:[%s3 + $0x60] sm:$0xff]
  %v54 = vld [vmem:[%s3 + $0x68] sm:$0xff]
  %v55 = vld [vmem:[%s3 + $0x70] sm:$0xff]
  %v56 = vld [vmem:[%s3 + $0x78] sm:$0xff]
  %v57 = vld [vmem:[%s2] sm:$0x1]
  %v58 = vld [vmem:[%s4] sm:$0x1]
  %v60 = vlaneseq
  %v61 = vshrl.u32 %v60, 7
  %v62 = vsub.s32 0, %v61
  %v63 = vrot.slane %v57, %v62
  %65 = vmatprep.subr.mxu0 0.0
  %66 = vmatpush1.msra.mxu0 %v40
  %67 = vmatprep.subr.mxu0 0.0
  %68 = vmatpush1.msra.mxu0 %v39
  %69 = vmatprep.subr.mxu0 0.0
  %70 = vmatpush1.msra.mxu0 %v38
  %71 = vmatprep.subr.mxu0 0.0
  %72 = vmatpush1.msra.mxu0 %v37
  %73 = vmatprep.subr.mxu0 0.0
  %74 = vmatpush1.msra.mxu0 %v36
  %75 = vmatprep.subr.mxu0 0.0
  %76 = vmatpush1.msra.mxu0 %v35
  %77 = vmatprep.subr.mxu0 0.0
  %78 = vmatpush1.msra.mxu0 %v34
  %79 = vmatprep.subr.mxu0 0.0
  %80 = vmatpush1.msra.mxu0 %v33
  %81 = vmatprep.subr.mxu0 0.0
  %82 = vmatpush1.msra.mxu0 %v32
  %83 = vmatprep.subr.mxu0 0.0
  %84 = vmatpush1.msra.mxu0 %v31
  %85 = vmatprep.subr.mxu0 0.0
  %86 = vmatpush1.msra.mxu0 %v30
  %87 = vmatprep.subr.mxu0 0.0
  %88 = vmatpush1.msra.mxu0 %v29
  %89 = vmatprep.subr.mxu0 0.0
  %90 = vmatpush1.msra.mxu0 %v28
  %91 = vmatprep.subr.mxu0 0.0
  %92 = vmatpush1.msra.mxu0 %v27
  %93 = vmatprep.subr.mxu0 0.0
  %94 = vmatpush1.msra.mxu0 %v26
  %95 = vmatprep.subr.mxu0 0.0
  %96 = vmatpush1.msra.mxu0 %v25
  %97 = vmatprep.subr.mxu0 0.0
  %98 = vmatpush2.msra.mxu0 0.0
  %99 = vmatprep.subr.mxu0 0.0
  %100 = vmatpush2.msra.mxu0 0.0
  %101 = vmatprep.subr.mxu0 0.0
  %102 = vmatpush2.msra.mxu0 0.0
  %103 = vmatprep.subr.mxu0 0.0
  %104 = vmatpush2.msra.mxu0 0.0
  %105 = vmatprep.subr.mxu0 0.0
  %106 = vmatpush2.msra.mxu0 0.0
  %107 = vmatprep.subr.mxu0 0.0
  %108 = vmatpush2.msra.mxu0 0.0
  %109 = vmatprep.subr.mxu0 0.0
  %110 = vmatpush2.msra.mxu0 0.0
  %111 = vmatprep.subr.mxu0 0.0
  %112 = vmatpush2.msra.mxu0 0.0
  %113 = vmatprep.subr.mxu0 0.0
  %114 = vmatpush2.msra.mxu0 0.0
  %115 = vmatprep.subr.mxu0 0.0
  %116 = vmatpush2.msra.mxu0 0.0
  %117 = vmatprep.subr.mxu0 0.0
  %118 = vmatpush2.msra.mxu0 0.0
  %119 = vmatprep.subr.mxu0 0.0
  %120 = vmatpush2.msra.mxu0 0.0
  %121 = vmatprep.subr.mxu0 0.0
  %122 = vmatpush2.msra.mxu0 0.0
  %123 = vmatprep.subr.mxu0 0.0
  %124 = vmatpush2.msra.mxu0 0.0
  %125 = vmatprep.subr.mxu0 0.0
  %126 = vmatpush2.msra.mxu0 0.0
  %127 = vmatprep.subr.mxu0 0.0
  %128 = vmatpush2.msra.mxu0 0.0
  %129 = vmatprep.mubr.f32.mxu0 0.0
  %130 = vmatmul.mubr.f32.gmra.mxu0 %v24
  %v131 = vpop.f32.mrf.mxu0
  %v132 = vadd.f32 %v63, %v131
  %v133 = vpop.f32.mrf.mxu0
  %134 = vdwg.mxu0
  %135 = vmatprep.subr.mxu0 0.0
  %136 = vmatpush1.msra.mxu0 %v56
  %137 = vmatprep.subr.mxu0 0.0
  %138 = vmatpush1.msra.mxu0 %v55
  %139 = vmatprep.subr.mxu0 0.0
  %140 = vmatpush1.msra.mxu0 %v54
  %141 = vmatprep.subr.mxu0 0.0
  %142 = vmatpush1.msra.mxu0 %v53
  %143 = vmatprep.subr.mxu0 0.0
  %144 = vmatpush1.msra.mxu0 %v52
  %145 = vmatprep.subr.mxu0 0.0
  %146 = vmatpush1.msra.mxu0 %v51
  %147 = vmatprep.subr.mxu0 0.0
  %148 = vmatpush1.msra.mxu0 %v50
  %149 = vmatprep.subr.mxu0 0.0
  %150 = vmatpush1.msra.mxu0 %v49
  %151 = vmatprep.subr.mxu0 0.0
  %152 = vmatpush1.msra.mxu0 %v48
  %153 = vmatprep.subr.mxu0 0.0
  %154 = vmatpush1.msra.mxu0 %v47
  %155 = vmatprep.subr.mxu0 0.0
  %156 = vmatpush1.msra.mxu0 %v46
  %157 = vmatprep.subr.mxu0 0.0
  %158 = vmatpush1.msra.mxu0 %v45
  %159 = vmatprep.subr.mxu0 0.0
  %160 = vmatpush1.msra.mxu0 %v44
  %161 = vmatprep.subr.mxu0 0.0
  %162 = vmatpush1.msra.mxu0 %v43
  %163 = vmatprep.subr.mxu0 0.0
  %164 = vmatpush1.msra.mxu0 %v42
  %165 = vmatprep.subr.mxu0 0.0
  %166 = vmatpush1.msra.mxu0 %v41
  %167 = vmatprep.subr.mxu0 0.0
  %168 = vmatpush2.msra.mxu0 0.0
  %169 = vmatprep.subr.mxu0 0.0
  %170 = vmatpush2.msra.mxu0 0.0
  %171 = vmatprep.subr.mxu0 0.0
  %172 = vmatpush2.msra.mxu0 0.0
  %173 = vmatprep.subr.mxu0 0.0
  %174 = vmatpush2.msra.mxu0 0.0
  %175 = vmatprep.subr.mxu0 0.0
  %176 = vmatpush2.msra.mxu0 0.0
  %177 = vmatprep.subr.mxu0 0.0
  %178 = vmatpush2.msra.mxu0 0.0
  %179 = vmatprep.subr.mxu0 0.0
  %180 = vmatpush2.msra.mxu0 0.0
  %181 = vmatprep.subr.mxu0 0.0
  %182 = vmatpush2.msra.mxu0 0.0
  %183 = vmatprep.subr.mxu0 0.0
  %184 = vmatpush2.msra.mxu0 0.0
  %185 = vmatprep.subr.mxu0 0.0
  %186 = vmatpush2.msra.mxu0 0.0
  %187 = vmatprep.subr.mxu0 0.0
  %188 = vmatpush2.msra.mxu0 0.0
  %189 = vmatprep.subr.mxu0 0.0
  %190 = vmatpush2.msra.mxu0 0.0
  %191 = vmatprep.subr.mxu0 0.0
  %192 = vmatpush2.msra.mxu0 0.0
  %193 = vmatprep.subr.mxu0 0.0
  %194 = vmatpush2.msra.mxu0 0.0
  %195 = vmatprep.subr.mxu0 0.0
  %196 = vmatpush2.msra.mxu0 0.0
  %197 = vmatprep.subr.mxu0 0.0
  %198 = vmatpush2.msra.mxu0 0.0
  %199 = vmatprep.mubr.f32.mxu0 0.0
  %200 = vmatmul.mubr.f32.gmra.mxu0 1.0
  %v201 = vpop.f32.mrf.mxu0
  %v202 = vadd.f32 0.0, %v201
  %v203 = vpop.f32.mrf.mxu0
  %204 = vdwg.mxu0
  %v206 = vlaneseq
  %v207 = vshrl.u32 %v206, 7
  %v208 = vsub.s32 0, %v207
  %v209 = vrot.slane %v58, %v208
  %v211 = vadd.f32 %v209, 0.0
  %v212 = vmax.f32 %v202, 1e-30
  %v213 = vlog2.pop %v212
  %v214 = vmul.f32 %v213, 0.6931472
  %v215 = vadd.f32 %v211, %v214
  %vm216 = vcmp.lt.s32.totalorder %v23, 32
  %v217 = vsel %vm216, 1, 0
  %vm218 = vcmp.eq.s32.totalorder %v217, 1
  %v219 = vsel %vm218, %v215, -1e+30
  %v220 = vmul.f32 %v132, -2.0
  %v221 = vmax.f32 %v220, 0.0
  %v222 = vand.u32 2147483647, %v220
  %v223 = vsub.f32 0.0, %v222
  %v224 = vmul.f32 %v223, 1.442695
  %v225 = vpow.pop %v224
  %v226 = vadd.f32 %v225, 1.0
  %v227 = vlog2.pop %v226
  %v228 = vmul.f32 %v227, 0.6931472
  %v229 = vmul.f32 -0.5, %v225
  %v230 = vadd.f32 %v229, 1.0
  %v231 = vmul.f32 %v230, %v225
  %v232 = vand.u32 2147483647, %v225
  %vm233 = vcmp.lt.f32.partialorder %v232, 0.0004427343
  %v234 = vsel %vm233, %v231, %v228
  %v235 = vadd.f32 %v221, %v234
  %v236 = vsub.f32 %v132, 0.6931472
  %v237 = vadd.f32 %v236, %v235
  %v238 = vmul.f32 %v237, -2.0
  %v239 = vadd.f32 %v219, %v238
  %v240 = vtanh.pop %v132
  %s241 = scalar_lea.vmem %s1, 128
  %v242 = vld [vmem:[%s241] sm:$0xff]
  %v243 = vld [vmem:[%s241 + $0x8] sm:$0xff]
  %v244 = vld [vmem:[%s241 + $0x10] sm:$0xff]
  %v245 = vld [vmem:[%s241 + $0x18] sm:$0xff]
  %v246 = vld [vmem:[%s241 + $0x20] sm:$0xff]
  %v247 = vld [vmem:[%s241 + $0x28] sm:$0xff]
  %v248 = vld [vmem:[%s241 + $0x30] sm:$0xff]
  %v249 = vld [vmem:[%s241 + $0x38] sm:$0xff]
  %v250 = vld [vmem:[%s241 + $0x40] sm:$0xff]
  %v251 = vld [vmem:[%s241 + $0x48] sm:$0xff]
  %v252 = vld [vmem:[%s241 + $0x50] sm:$0xff]
  %v253 = vld [vmem:[%s241 + $0x58] sm:$0xff]
  %v254 = vld [vmem:[%s241 + $0x60] sm:$0xff]
  %v255 = vld [vmem:[%s241 + $0x68] sm:$0xff]
  %v256 = vld [vmem:[%s241 + $0x70] sm:$0xff]
  %v257 = vld [vmem:[%s241 + $0x78] sm:$0xff]
  %s258 = scalar_lea.vmem %s3, 128
  %v259 = vld [vmem:[%s258] sm:$0xff]
  %v260 = vld [vmem:[%s258 + $0x8] sm:$0xff]
  %v261 = vld [vmem:[%s258 + $0x10] sm:$0xff]
  %v262 = vld [vmem:[%s258 + $0x18] sm:$0xff]
  %v263 = vld [vmem:[%s258 + $0x20] sm:$0xff]
  %v264 = vld [vmem:[%s258 + $0x28] sm:$0xff]
  %v265 = vld [vmem:[%s258 + $0x30] sm:$0xff]
  %v266 = vld [vmem:[%s258 + $0x38] sm:$0xff]
  %v267 = vld [vmem:[%s258 + $0x40] sm:$0xff]
  %v268 = vld [vmem:[%s258 + $0x48] sm:$0xff]
  %v269 = vld [vmem:[%s258 + $0x50] sm:$0xff]
  %v270 = vld [vmem:[%s258 + $0x58] sm:$0xff]
  %v271 = vld [vmem:[%s258 + $0x60] sm:$0xff]
  %v272 = vld [vmem:[%s258 + $0x68] sm:$0xff]
  %v273 = vld [vmem:[%s258 + $0x70] sm:$0xff]
  %v274 = vld [vmem:[%s258 + $0x78] sm:$0xff]
  %s275 = scalar_lea.vmem %s2, 1
  %v276 = vld [vmem:[%s275] sm:$0x1]
  %s277 = scalar_lea.vmem %s4, 1
  %v278 = vld [vmem:[%s277] sm:$0x1]
  %v280 = vlaneseq
  %v281 = vshrl.u32 %v280, 7
  %v282 = vsub.s32 0, %v281
  %v283 = vrot.slane %v276, %v282
  %285 = vmatprep.subr.mxu0 0.0
  %286 = vmatpush1.msra.mxu0 %v257
  %287 = vmatprep.subr.mxu0 0.0
  %288 = vmatpush1.msra.mxu0 %v256
  %289 = vmatprep.subr.mxu0 0.0
  %290 = vmatpush1.msra.mxu0 %v255
  %291 = vmatprep.subr.mxu0 0.0
  %292 = vmatpush1.msra.mxu0 %v254
  %293 = vmatprep.subr.mxu0 0.0
  %294 = vmatpush1.msra.mxu0 %v253
  %295 = vmatprep.subr.mxu0 0.0
  %296 = vmatpush1.msra.mxu0 %v252
  %297 = vmatprep.subr.mxu0 0.0
  %298 = vmatpush1.msra.mxu0 %v251
  %299 = vmatprep.subr.mxu0 0.0
  %300 = vmatpush1.msra.mxu0 %v250
  %301 = vmatprep.subr.mxu0 0.0
  %302 = vmatpush1.msra.mxu0 %v249
  %303 = vmatprep.subr.mxu0 0.0
  %304 = vmatpush1.msra.mxu0 %v248
  %305 = vmatprep.subr.mxu0 0.0
  %306 = vmatpush1.msra.mxu0 %v247
  %307 = vmatprep.subr.mxu0 0.0
  %308 = vmatpush1.msra.mxu0 %v246
  %309 = vmatprep.subr.mxu0 0.0
  %310 = vmatpush1.msra.mxu0 %v245
  %311 = vmatprep.subr.mxu0 0.0
  %312 = vmatpush1.msra.mxu0 %v244
  %313 = vmatprep.subr.mxu0 0.0
  %314 = vmatpush1.msra.mxu0 %v243
  %315 = vmatprep.subr.mxu0 0.0
  %316 = vmatpush1.msra.mxu0 %v242
  %317 = vmatprep.subr.mxu0 0.0
  %318 = vmatpush2.msra.mxu0 0.0
  %319 = vmatprep.subr.mxu0 0.0
  %320 = vmatpush2.msra.mxu0 0.0
  %321 = vmatprep.subr.mxu0 0.0
  %322 = vmatpush2.msra.mxu0 0.0
  %323 = vmatprep.subr.mxu0 0.0
  %324 = vmatpush2.msra.mxu0 0.0
  %325 = vmatprep.subr.mxu0 0.0
  %326 = vmatpush2.msra.mxu0 0.0
  %327 = vmatprep.subr.mxu0 0.0
  %328 = vmatpush2.msra.mxu0 0.0
  %329 = vmatprep.subr.mxu0 0.0
  %330 = vmatpush2.msra.mxu0 0.0
  %331 = vmatprep.subr.mxu0 0.0
  %332 = vmatpush2.msra.mxu0 0.0
  %333 = vmatprep.subr.mxu0 0.0
  %334 = vmatpush2.msra.mxu0 0.0
  %335 = vmatprep.subr.mxu0 0.0
  %336 = vmatpush2.msra.mxu0 0.0
  %337 = vmatprep.subr.mxu0 0.0
  %338 = vmatpush2.msra.mxu0 0.0
  %339 = vmatprep.subr.mxu0 0.0
  %340 = vmatpush2.msra.mxu0 0.0
  %341 = vmatprep.subr.mxu0 0.0
  %342 = vmatpush2.msra.mxu0 0.0
  %343 = vmatprep.subr.mxu0 0.0
  %344 = vmatpush2.msra.mxu0 0.0
  %345 = vmatprep.subr.mxu0 0.0
  %346 = vmatpush2.msra.mxu0 0.0
  %347 = vmatprep.subr.mxu0 0.0
  %348 = vmatpush2.msra.mxu0 0.0
  %349 = vmatprep.mubr.f32.mxu0 0.0
  %350 = vmatmul.mubr.f32.gmra.mxu0 %v240
  %v351 = vpop.f32.mrf.mxu0
  %v352 = vadd.f32 %v283, %v351
  %v353 = vpop.f32.mrf.mxu0
  %354 = vdwg.mxu0
  %355 = vmax.xlane.f32.xlu0 %v239
  %v356 = vpop.xlane.xlu0 %355
  %v357 = vsub.f32 %v239, %v356
  %v358 = vmul.f32 %v357, 1.442695
  %v359 = vpow.pop %v358
  %360 = vmatprep.subr.mxu0 0.0
  %361 = vmatpush1.msra.mxu0 %v274
  %362 = vmatprep.subr.mxu0 0.0
  %363 = vmatpush1.msra.mxu0 %v273
  %364 = vmatprep.subr.mxu0 0.0
  %365 = vmatpush1.msra.mxu0 %v272
  %366 = vmatprep.subr.mxu0 0.0
  %367 = vmatpush1.msra.mxu0 %v271
  %368 = vmatprep.subr.mxu0 0.0
  %369 = vmatpush1.msra.mxu0 %v270
  %370 = vmatprep.subr.mxu0 0.0
  %371 = vmatpush1.msra.mxu0 %v269
  %372 = vmatprep.subr.mxu0 0.0
  %373 = vmatpush1.msra.mxu0 %v268
  %374 = vmatprep.subr.mxu0 0.0
  %375 = vmatpush1.msra.mxu0 %v267
  %376 = vmatprep.subr.mxu0 0.0
  %377 = vmatpush1.msra.mxu0 %v266
  %378 = vmatprep.subr.mxu0 0.0
  %379 = vmatpush1.msra.mxu0 %v265
  %380 = vmatprep.subr.mxu0 0.0
  %381 = vmatpush1.msra.mxu0 %v264
  %382 = vmatprep.subr.mxu0 0.0
  %383 = vmatpush1.msra.mxu0 %v263
  %384 = vmatprep.subr.mxu0 0.0
  %385 = vmatpush1.msra.mxu0 %v262
  %386 = vmatprep.subr.mxu0 0.0
  %387 = vmatpush1.msra.mxu0 %v261
  %388 = vmatprep.subr.mxu0 0.0
  %389 = vmatpush1.msra.mxu0 %v260
  %390 = vmatprep.subr.mxu0 0.0
  %391 = vmatpush1.msra.mxu0 %v259
  %392 = vmatprep.subr.mxu0 0.0
  %393 = vmatpush2.msra.mxu0 0.0
  %394 = vmatprep.subr.mxu0 0.0
  %395 = vmatpush2.msra.mxu0 0.0
  %396 = vmatprep.subr.mxu0 0.0
  %397 = vmatpush2.msra.mxu0 0.0
  %398 = vmatprep.subr.mxu0 0.0
  %399 = vmatpush2.msra.mxu0 0.0
  %400 = vmatprep.subr.mxu0 0.0
  %401 = vmatpush2.msra.mxu0 0.0
  %402 = vmatprep.subr.mxu0 0.0
  %403 = vmatpush2.msra.mxu0 0.0
  %404 = vmatprep.subr.mxu0 0.0
  %405 = vmatpush2.msra.mxu0 0.0
  %406 = vmatprep.subr.mxu0 0.0
  %407 = vmatpush2.msra.mxu0 0.0
  %408 = vmatprep.subr.mxu0 0.0
  %409 = vmatpush2.msra.mxu0 0.0
  %410 = vmatprep.subr.mxu0 0.0
  %411 = vmatpush2.msra.mxu0 0.0
  %412 = vmatprep.subr.mxu0 0.0
  %413 = vmatpush2.msra.mxu0 0.0
  %414 = vmatprep.subr.mxu0 0.0
  %415 = vmatpush2.msra.mxu0 0.0
  %416 = vmatprep.subr.mxu0 0.0
  %417 = vmatpush2.msra.mxu0 0.0
  %418 = vmatprep.subr.mxu0 0.0
  %419 = vmatpush2.msra.mxu0 0.0
  %420 = vmatprep.subr.mxu0 0.0
  %421 = vmatpush2.msra.mxu0 0.0
  %422 = vmatprep.subr.mxu0 0.0
  %423 = vmatpush2.msra.mxu0 0.0
  %424 = vmatprep.mubr.f32.mxu0 0.0
  %425 = vmatmul.mubr.f32.gmra.mxu0 %v359
  %v426 = vpop.f32.mrf.mxu0
  %v427 = vadd.f32 0.0, %v426
  %v428 = vpop.f32.mrf.mxu0
  %429 = vdwg.mxu0
  %v431 = vlaneseq
  %v432 = vshrl.u32 %v431, 7
  %v433 = vsub.s32 0, %v432
  %v434 = vrot.slane %v278, %v433
  %v436 = vadd.f32 %v356, %v434
  %v437 = vmax.f32 %v427, 1e-30
  %v438 = vlog2.pop %v437
  %v439 = vmul.f32 %v438, 0.6931472
  %v440 = vadd.f32 %v436, %v439
  %v441 = vsel %vm218, %v440, -1e+30
  %v442 = vmul.f32 %v352, -2.0
  %v443 = vmax.f32 %v442, 0.0
  %v444 = vand.u32 2147483647, %v442
  %v445 = vsub.f32 0.0, %v444
  %v446 = vmul.f32 %v445, 1.442695
  %v447 = vpow.pop %v446
  %v448 = vadd.f32 %v447, 1.0
  %v449 = vlog2.pop %v448
  %v450 = vmul.f32 %v449, 0.6931472
  %v451 = vmul.f32 -0.5, %v447
  %v452 = vadd.f32 %v451, 1.0
  %v453 = vmul.f32 %v452, %v447
  %v454 = vand.u32 2147483647, %v447
  %vm455 = vcmp.lt.f32.partialorder %v454, 0.0004427343
  %v456 = vsel %vm455, %v453, %v450
  %v457 = vadd.f32 %v443, %v456
  %v458 = vsub.f32 %v352, 0.6931472
  %v459 = vadd.f32 %v458, %v457
  %v460 = vmul.f32 %v459, -2.0
  %v461 = vadd.f32 %v441, %v460
  %v462 = vtanh.pop %v352
  %s463 = scalar_lea.vmem %s1, 256
  %v464 = vld [vmem:[%s463] sm:$0xff]
  %v465 = vld [vmem:[%s463 + $0x8] sm:$0xff]
  %v466 = vld [vmem:[%s463 + $0x10] sm:$0xff]
  %v467 = vld [vmem:[%s463 + $0x18] sm:$0xff]
  %v468 = vld [vmem:[%s463 + $0x20] sm:$0xff]
  %v469 = vld [vmem:[%s463 + $0x28] sm:$0xff]
  %v470 = vld [vmem:[%s463 + $0x30] sm:$0xff]
  %v471 = vld [vmem:[%s463 + $0x38] sm:$0xff]
  %v472 = vld [vmem:[%s463 + $0x40] sm:$0xff]
  %v473 = vld [vmem:[%s463 + $0x48] sm:$0xff]
  %v474 = vld [vmem:[%s463 + $0x50] sm:$0xff]
  %v475 = vld [vmem:[%s463 + $0x58] sm:$0xff]
  %v476 = vld [vmem:[%s463 + $0x60] sm:$0xff]
  %v477 = vld [vmem:[%s463 + $0x68] sm:$0xff]
  %v478 = vld [vmem:[%s463 + $0x70] sm:$0xff]
  %v479 = vld [vmem:[%s463 + $0x78] sm:$0xff]
  %s480 = scalar_lea.vmem %s3, 256
  %v481 = vld [vmem:[%s480] sm:$0xff]
  %v482 = vld [vmem:[%s480 + $0x8] sm:$0xff]
  %v483 = vld [vmem:[%s480 + $0x10] sm:$0xff]
  %v484 = vld [vmem:[%s480 + $0x18] sm:$0xff]
  %v485 = vld [vmem:[%s480 + $0x20] sm:$0xff]
  %v486 = vld [vmem:[%s480 + $0x28] sm:$0xff]
  %v487 = vld [vmem:[%s480 + $0x30] sm:$0xff]
  %v488 = vld [vmem:[%s480 + $0x38] sm:$0xff]
  %v489 = vld [vmem:[%s480 + $0x40] sm:$0xff]
  %v490 = vld [vmem:[%s480 + $0x48] sm:$0xff]
  %v491 = vld [vmem:[%s480 + $0x50] sm:$0xff]
  %v492 = vld [vmem:[%s480 + $0x58] sm:$0xff]
  %v493 = vld [vmem:[%s480 + $0x60] sm:$0xff]
  %v494 = vld [vmem:[%s480 + $0x68] sm:$0xff]
  %v495 = vld [vmem:[%s480 + $0x70] sm:$0xff]
  %v496 = vld [vmem:[%s480 + $0x78] sm:$0xff]
  %s497 = scalar_lea.vmem %s2, 2
  %v498 = vld [vmem:[%s497] sm:$0x1]
  %s499 = scalar_lea.vmem %s4, 2
  %v500 = vld [vmem:[%s499] sm:$0x1]
  %v502 = vlaneseq
  %v503 = vshrl.u32 %v502, 7
  %v504 = vsub.s32 0, %v503
  %v505 = vrot.slane %v498, %v504
  %507 = vmatprep.subr.mxu0 0.0
  %508 = vmatpush1.msra.mxu0 %v479
  %509 = vmatprep.subr.mxu0 0.0
  %510 = vmatpush1.msra.mxu0 %v478
  %511 = vmatprep.subr.mxu0 0.0
  %512 = vmatpush1.msra.mxu0 %v477
  %513 = vmatprep.subr.mxu0 0.0
  %514 = vmatpush1.msra.mxu0 %v476
  %515 = vmatprep.subr.mxu0 0.0
  %516 = vmatpush1.msra.mxu0 %v475
  %517 = vmatprep.subr.mxu0 0.0
  %518 = vmatpush1.msra.mxu0 %v474
  %519 = vmatprep.subr.mxu0 0.0
  %520 = vmatpush1.msra.mxu0 %v473
  %521 = vmatprep.subr.mxu0 0.0
  %522 = vmatpush1.msra.mxu0 %v472
  %523 = vmatprep.subr.mxu0 0.0
  %524 = vmatpush1.msra.mxu0 %v471
  %525 = vmatprep.subr.mxu0 0.0
  %526 = vmatpush1.msra.mxu0 %v470
  %527 = vmatprep.subr.mxu0 0.0
  %528 = vmatpush1.msra.mxu0 %v469
  %529 = vmatprep.subr.mxu0 0.0
  %530 = vmatpush1.msra.mxu0 %v468
  %531 = vmatprep.subr.mxu0 0.0
  %532 = vmatpush1.msra.mxu0 %v467
  %533 = vmatprep.subr.mxu0 0.0
  %534 = vmatpush1.msra.mxu0 %v466
  %535 = vmatprep.subr.mxu0 0.0
  %536 = vmatpush1.msra.mxu0 %v465
  %537 = vmatprep.subr.mxu0 0.0
  %538 = vmatpush1.msra.mxu0 %v464
  %539 = vmatprep.subr.mxu0 0.0
  %540 = vmatpush2.msra.mxu0 0.0
  %541 = vmatprep.subr.mxu0 0.0
  %542 = vmatpush2.msra.mxu0 0.0
  %543 = vmatprep.subr.mxu0 0.0
  %544 = vmatpush2.msra.mxu0 0.0
  %545 = vmatprep.subr.mxu0 0.0
  %546 = vmatpush2.msra.mxu0 0.0
  %547 = vmatprep.subr.mxu0 0.0
  %548 = vmatpush2.msra.mxu0 0.0
  %549 = vmatprep.subr.mxu0 0.0
  %550 = vmatpush2.msra.mxu0 0.0
  %551 = vmatprep.subr.mxu0 0.0
  %552 = vmatpush2.msra.mxu0 0.0
  %553 = vmatprep.subr.mxu0 0.0
  %554 = vmatpush2.msra.mxu0 0.0
  %555 = vmatprep.subr.mxu0 0.0
  %556 = vmatpush2.msra.mxu0 0.0
  %557 = vmatprep.subr.mxu0 0.0
  %558 = vmatpush2.msra.mxu0 0.0
  %559 = vmatprep.subr.mxu0 0.0
  %560 = vmatpush2.msra.mxu0 0.0
  %561 = vmatprep.subr.mxu0 0.0
  %562 = vmatpush2.msra.mxu0 0.0
  %563 = vmatprep.subr.mxu0 0.0
  %564 = vmatpush2.msra.mxu0 0.0
  %565 = vmatprep.subr.mxu0 0.0
  %566 = vmatpush2.msra.mxu0 0.0
  %567 = vmatprep.subr.mxu0 0.0
  %568 = vmatpush2.msra.mxu0 0.0
  %569 = vmatprep.subr.mxu0 0.0
  %570 = vmatpush2.msra.mxu0 0.0
  %571 = vmatprep.mubr.f32.mxu0 0.0
  %572 = vmatmul.mubr.f32.gmra.mxu0 %v462
  %v573 = vpop.f32.mrf.mxu0
  %v574 = vadd.f32 %v505, %v573
  %v575 = vpop.f32.mrf.mxu0
  %576 = vdwg.mxu0
  %577 = vmax.xlane.f32.xlu0 %v461
  %v578 = vpop.xlane.xlu0 %577
  %v579 = vsub.f32 %v461, %v578
  %v580 = vmul.f32 %v579, 1.442695
  %v581 = vpow.pop %v580
  %582 = vmatprep.subr.mxu0 0.0
  %583 = vmatpush1.msra.mxu0 %v496
  %584 = vmatprep.subr.mxu0 0.0
  %585 = vmatpush1.msra.mxu0 %v495
  %586 = vmatprep.subr.mxu0 0.0
  %587 = vmatpush1.msra.mxu0 %v494
  %588 = vmatprep.subr.mxu0 0.0
  %589 = vmatpush1.msra.mxu0 %v493
  %590 = vmatprep.subr.mxu0 0.0
  %591 = vmatpush1.msra.mxu0 %v492
  %592 = vmatprep.subr.mxu0 0.0
  %593 = vmatpush1.msra.mxu0 %v491
  %594 = vmatprep.subr.mxu0 0.0
  %595 = vmatpush1.msra.mxu0 %v490
  %596 = vmatprep.subr.mxu0 0.0
  %597 = vmatpush1.msra.mxu0 %v489
  %598 = vmatprep.subr.mxu0 0.0
  %599 = vmatpush1.msra.mxu0 %v488
  %600 = vmatprep.subr.mxu0 0.0
  %601 = vmatpush1.msra.mxu0 %v487
  %602 = vmatprep.subr.mxu0 0.0
  %603 = vmatpush1.msra.mxu0 %v486
  %604 = vmatprep.subr.mxu0 0.0
  %605 = vmatpush1.msra.mxu0 %v485
  %606 = vmatprep.subr.mxu0 0.0
  %607 = vmatpush1.msra.mxu0 %v484
  %608 = vmatprep.subr.mxu0 0.0
  %609 = vmatpush1.msra.mxu0 %v483
  %610 = vmatprep.subr.mxu0 0.0
  %611 = vmatpush1.msra.mxu0 %v482
  %612 = vmatprep.subr.mxu0 0.0
  %613 = vmatpush1.msra.mxu0 %v481
  %614 = vmatprep.subr.mxu0 0.0
  %615 = vmatpush2.msra.mxu0 0.0
  %616 = vmatprep.subr.mxu0 0.0
  %617 = vmatpush2.msra.mxu0 0.0
  %618 = vmatprep.subr.mxu0 0.0
  %619 = vmatpush2.msra.mxu0 0.0
  %620 = vmatprep.subr.mxu0 0.0
  %621 = vmatpush2.msra.mxu0 0.0
  %622 = vmatprep.subr.mxu0 0.0
  %623 = vmatpush2.msra.mxu0 0.0
  %624 = vmatprep.subr.mxu0 0.0
  %625 = vmatpush2.msra.mxu0 0.0
  %626 = vmatprep.subr.mxu0 0.0
  %627 = vmatpush2.msra.mxu0 0.0
  %628 = vmatprep.subr.mxu0 0.0
  %629 = vmatpush2.msra.mxu0 0.0
  %630 = vmatprep.subr.mxu0 0.0
  %631 = vmatpush2.msra.mxu0 0.0
  %632 = vmatprep.subr.mxu0 0.0
  %633 = vmatpush2.msra.mxu0 0.0
  %634 = vmatprep.subr.mxu0 0.0
  %635 = vmatpush2.msra.mxu0 0.0
  %636 = vmatprep.subr.mxu0 0.0
  %637 = vmatpush2.msra.mxu0 0.0
  %638 = vmatprep.subr.mxu0 0.0
  %639 = vmatpush2.msra.mxu0 0.0
  %640 = vmatprep.subr.mxu0 0.0
  %641 = vmatpush2.msra.mxu0 0.0
  %642 = vmatprep.subr.mxu0 0.0
  %643 = vmatpush2.msra.mxu0 0.0
  %644 = vmatprep.subr.mxu0 0.0
  %645 = vmatpush2.msra.mxu0 0.0
  %646 = vmatprep.mubr.f32.mxu0 0.0
  %647 = vmatmul.mubr.f32.gmra.mxu0 %v581
  %v648 = vpop.f32.mrf.mxu0
  %v649 = vadd.f32 0.0, %v648
  %v650 = vpop.f32.mrf.mxu0
  %651 = vdwg.mxu0
  %v653 = vlaneseq
  %v654 = vshrl.u32 %v653, 7
  %v655 = vsub.s32 0, %v654
  %v656 = vrot.slane %v500, %v655
  %v658 = vadd.f32 %v578, %v656
  %v659 = vmax.f32 %v649, 1e-30
  %v660 = vlog2.pop %v659
  %v661 = vmul.f32 %v660, 0.6931472
  %v662 = vadd.f32 %v658, %v661
  %v663 = vsel %vm218, %v662, -1e+30
  %v664 = vmul.f32 %v574, -2.0
  %v665 = vmax.f32 %v664, 0.0
  %v666 = vand.u32 2147483647, %v664
  %v667 = vsub.f32 0.0, %v666
  %v668 = vmul.f32 %v667, 1.442695
  %v669 = vpow.pop %v668
  %v670 = vadd.f32 %v669, 1.0
  %v671 = vlog2.pop %v670
  %v672 = vmul.f32 %v671, 0.6931472
  %v673 = vmul.f32 -0.5, %v669
  %v674 = vadd.f32 %v673, 1.0
  %v675 = vmul.f32 %v674, %v669
  %v676 = vand.u32 2147483647, %v669
  %vm677 = vcmp.lt.f32.partialorder %v676, 0.0004427343
  %v678 = vsel %vm677, %v675, %v672
  %v679 = vadd.f32 %v665, %v678
  %v680 = vsub.f32 %v574, 0.6931472
  %v681 = vadd.f32 %v680, %v679
  %v682 = vmul.f32 %v681, -2.0
  %v683 = vadd.f32 %v663, %v682
  %v684 = vtanh.pop %v574
  %s685 = scalar_lea.vmem %s1, 384
  %v686 = vld [vmem:[%s685] sm:$0xff]
  %v687 = vld [vmem:[%s685 + $0x8] sm:$0xff]
  %v688 = vld [vmem:[%s685 + $0x10] sm:$0xff]
  %v689 = vld [vmem:[%s685 + $0x18] sm:$0xff]
  %v690 = vld [vmem:[%s685 + $0x20] sm:$0xff]
  %v691 = vld [vmem:[%s685 + $0x28] sm:$0xff]
  %v692 = vld [vmem:[%s685 + $0x30] sm:$0xff]
  %v693 = vld [vmem:[%s685 + $0x38] sm:$0xff]
  %v694 = vld [vmem:[%s685 + $0x40] sm:$0xff]
  %v695 = vld [vmem:[%s685 + $0x48] sm:$0xff]
  %v696 = vld [vmem:[%s685 + $0x50] sm:$0xff]
  %v697 = vld [vmem:[%s685 + $0x58] sm:$0xff]
  %v698 = vld [vmem:[%s685 + $0x60] sm:$0xff]
  %v699 = vld [vmem:[%s685 + $0x68] sm:$0xff]
  %v700 = vld [vmem:[%s685 + $0x70] sm:$0xff]
  %v701 = vld [vmem:[%s685 + $0x78] sm:$0xff]
  %s702 = scalar_lea.vmem %s3, 384
  %v703 = vld [vmem:[%s702] sm:$0xff]
  %v704 = vld [vmem:[%s702 + $0x8] sm:$0xff]
  %v705 = vld [vmem:[%s702 + $0x10] sm:$0xff]
  %v706 = vld [vmem:[%s702 + $0x18] sm:$0xff]
  %v707 = vld [vmem:[%s702 + $0x20] sm:$0xff]
  %v708 = vld [vmem:[%s702 + $0x28] sm:$0xff]
  %v709 = vld [vmem:[%s702 + $0x30] sm:$0xff]
  %v710 = vld [vmem:[%s702 + $0x38] sm:$0xff]
  %v711 = vld [vmem:[%s702 + $0x40] sm:$0xff]
  %v712 = vld [vmem:[%s702 + $0x48] sm:$0xff]
  %v713 = vld [vmem:[%s702 + $0x50] sm:$0xff]
  %v714 = vld [vmem:[%s702 + $0x58] sm:$0xff]
  %v715 = vld [vmem:[%s702 + $0x60] sm:$0xff]
  %v716 = vld [vmem:[%s702 + $0x68] sm:$0xff]
  %v717 = vld [vmem:[%s702 + $0x70] sm:$0xff]
  %v718 = vld [vmem:[%s702 + $0x78] sm:$0xff]
  %s719 = scalar_lea.vmem %s2, 3
  %v720 = vld [vmem:[%s719] sm:$0x1]
  %s721 = scalar_lea.vmem %s4, 3
  %v722 = vld [vmem:[%s721] sm:$0x1]
  %v724 = vlaneseq
  %v725 = vshrl.u32 %v724, 7
  %v726 = vsub.s32 0, %v725
  %v727 = vrot.slane %v720, %v726
  %729 = vmatprep.subr.mxu0 0.0
  %730 = vmatpush1.msra.mxu0 %v701
  %731 = vmatprep.subr.mxu0 0.0
  %732 = vmatpush1.msra.mxu0 %v700
  %733 = vmatprep.subr.mxu0 0.0
  %734 = vmatpush1.msra.mxu0 %v699
  %735 = vmatprep.subr.mxu0 0.0
  %736 = vmatpush1.msra.mxu0 %v698
  %737 = vmatprep.subr.mxu0 0.0
  %738 = vmatpush1.msra.mxu0 %v697
  %739 = vmatprep.subr.mxu0 0.0
  %740 = vmatpush1.msra.mxu0 %v696
  %741 = vmatprep.subr.mxu0 0.0
  %742 = vmatpush1.msra.mxu0 %v695
  %743 = vmatprep.subr.mxu0 0.0
  %744 = vmatpush1.msra.mxu0 %v694
  %745 = vmatprep.subr.mxu0 0.0
  %746 = vmatpush1.msra.mxu0 %v693
  %747 = vmatprep.subr.mxu0 0.0
  %748 = vmatpush1.msra.mxu0 %v692
  %749 = vmatprep.subr.mxu0 0.0
  %750 = vmatpush1.msra.mxu0 %v691
  %751 = vmatprep.subr.mxu0 0.0
  %752 = vmatpush1.msra.mxu0 %v690
  %753 = vmatprep.subr.mxu0 0.0
  %754 = vmatpush1.msra.mxu0 %v689
  %755 = vmatprep.subr.mxu0 0.0
  %756 = vmatpush1.msra.mxu0 %v688
  %757 = vmatprep.subr.mxu0 0.0
  %758 = vmatpush1.msra.mxu0 %v687
  %759 = vmatprep.subr.mxu0 0.0
  %760 = vmatpush1.msra.mxu0 %v686
  %761 = vmatprep.subr.mxu0 0.0
  %762 = vmatpush2.msra.mxu0 0.0
  %763 = vmatprep.subr.mxu0 0.0
  %764 = vmatpush2.msra.mxu0 0.0
  %765 = vmatprep.subr.mxu0 0.0
  %766 = vmatpush2.msra.mxu0 0.0
  %767 = vmatprep.subr.mxu0 0.0
  %768 = vmatpush2.msra.mxu0 0.0
  %769 = vmatprep.subr.mxu0 0.0
  %770 = vmatpush2.msra.mxu0 0.0
  %771 = vmatprep.subr.mxu0 0.0
  %772 = vmatpush2.msra.mxu0 0.0
  %773 = vmatprep.subr.mxu0 0.0
  %774 = vmatpush2.msra.mxu0 0.0
  %775 = vmatprep.subr.mxu0 0.0
  %776 = vmatpush2.msra.mxu0 0.0
  %777 = vmatprep.subr.mxu0 0.0
  %778 = vmatpush2.msra.mxu0 0.0
  %779 = vmatprep.subr.mxu0 0.0
  %780 = vmatpush2.msra.mxu0 0.0
  %781 = vmatprep.subr.mxu0 0.0
  %782 = vmatpush2.msra.mxu0 0.0
  %783 = vmatprep.subr.mxu0 0.0
  %784 = vmatpush2.msra.mxu0 0.0
  %785 = vmatprep.subr.mxu0 0.0
  %786 = vmatpush2.msra.mxu0 0.0
  %787 = vmatprep.subr.mxu0 0.0
  %788 = vmatpush2.msra.mxu0 0.0
  %789 = vmatprep.subr.mxu0 0.0
  %790 = vmatpush2.msra.mxu0 0.0
  %791 = vmatprep.subr.mxu0 0.0
  %792 = vmatpush2.msra.mxu0 0.0
  %793 = vmatprep.mubr.f32.mxu0 0.0
  %794 = vmatmul.mubr.f32.gmra.mxu0 %v684
  %v795 = vpop.f32.mrf.mxu0
  %v796 = vadd.f32 %v727, %v795
  %v797 = vpop.f32.mrf.mxu0
  %798 = vdwg.mxu0
  %799 = vmax.xlane.f32.xlu0 %v683
  %v800 = vpop.xlane.xlu0 %799
  %v801 = vsub.f32 %v683, %v800
  %v802 = vmul.f32 %v801, 1.442695
  %v803 = vpow.pop %v802
  %804 = vmatprep.subr.mxu0 0.0
  %805 = vmatpush1.msra.mxu0 %v718
  %806 = vmatprep.subr.mxu0 0.0
  %807 = vmatpush1.msra.mxu0 %v717
  %808 = vmatprep.subr.mxu0 0.0
  %809 = vmatpush1.msra.mxu0 %v716
  %810 = vmatprep.subr.mxu0 0.0
  %811 = vmatpush1.msra.mxu0 %v715
  %812 = vmatprep.subr.mxu0 0.0
  %813 = vmatpush1.msra.mxu0 %v714
  %814 = vmatprep.subr.mxu0 0.0
  %815 = vmatpush1.msra.mxu0 %v713
  %816 = vmatprep.subr.mxu0 0.0
  %817 = vmatpush1.msra.mxu0 %v712
  %818 = vmatprep.subr.mxu0 0.0
  %819 = vmatpush1.msra.mxu0 %v711
  %820 = vmatprep.subr.mxu0 0.0
  %821 = vmatpush1.msra.mxu0 %v710
  %822 = vmatprep.subr.mxu0 0.0
  %823 = vmatpush1.msra.mxu0 %v709
  %824 = vmatprep.subr.mxu0 0.0
  %825 = vmatpush1.msra.mxu0 %v708
  %826 = vmatprep.subr.mxu0 0.0
  %827 = vmatpush1.msra.mxu0 %v707
  %828 = vmatprep.subr.mxu0 0.0
  %829 = vmatpush1.msra.mxu0 %v706
  %830 = vmatprep.subr.mxu0 0.0
  %831 = vmatpush1.msra.mxu0 %v705
  %832 = vmatprep.subr.mxu0 0.0
  %833 = vmatpush1.msra.mxu0 %v704
  %834 = vmatprep.subr.mxu0 0.0
  %835 = vmatpush1.msra.mxu0 %v703
  %836 = vmatprep.subr.mxu0 0.0
  %837 = vmatpush2.msra.mxu0 0.0
  %838 = vmatprep.subr.mxu0 0.0
  %839 = vmatpush2.msra.mxu0 0.0
  %840 = vmatprep.subr.mxu0 0.0
  %841 = vmatpush2.msra.mxu0 0.0
  %842 = vmatprep.subr.mxu0 0.0
  %843 = vmatpush2.msra.mxu0 0.0
  %844 = vmatprep.subr.mxu0 0.0
  %845 = vmatpush2.msra.mxu0 0.0
  %846 = vmatprep.subr.mxu0 0.0
  %847 = vmatpush2.msra.mxu0 0.0
  %848 = vmatprep.subr.mxu0 0.0
  %849 = vmatpush2.msra.mxu0 0.0
  %850 = vmatprep.subr.mxu0 0.0
  %851 = vmatpush2.msra.mxu0 0.0
  %852 = vmatprep.subr.mxu0 0.0
  %853 = vmatpush2.msra.mxu0 0.0
  %854 = vmatprep.subr.mxu0 0.0
  %855 = vmatpush2.msra.mxu0 0.0
  %856 = vmatprep.subr.mxu0 0.0
  %857 = vmatpush2.msra.mxu0 0.0
  %858 = vmatprep.subr.mxu0 0.0
  %859 = vmatpush2.msra.mxu0 0.0
  %860 = vmatprep.subr.mxu0 0.0
  %861 = vmatpush2.msra.mxu0 0.0
  %862 = vmatprep.subr.mxu0 0.0
  %863 = vmatpush2.msra.mxu0 0.0
  %864 = vmatprep.subr.mxu0 0.0
  %865 = vmatpush2.msra.mxu0 0.0
  %866 = vmatprep.subr.mxu0 0.0
  %867 = vmatpush2.msra.mxu0 0.0
  %868 = vmatprep.mubr.f32.mxu0 0.0
  %869 = vmatmul.mubr.f32.gmra.mxu0 %v803
  %v870 = vpop.f32.mrf.mxu0
  %v871 = vadd.f32 0.0, %v870
  %v872 = vpop.f32.mrf.mxu0
  %873 = vdwg.mxu0
  %v875 = vlaneseq
  %v876 = vshrl.u32 %v875, 7
  %v877 = vsub.s32 0, %v876
  %v878 = vrot.slane %v722, %v877
  %v880 = vadd.f32 %v800, %v878
  %v881 = vmax.f32 %v871, 1e-30
  %v882 = vlog2.pop %v881
  %v883 = vmul.f32 %v882, 0.6931472
  %v884 = vadd.f32 %v880, %v883
  %vm885 = vcmp.lt.s32.totalorder %v23, 4
  %v886 = vsel %vm885, 1, 0
  %vm887 = vcmp.eq.s32.totalorder %v886, 1
  %v888 = vsel %vm887, %v884, -1e+30
  %889 = vst [vmem:[%s5] sm:$0xff] %v796
  %890 = vst [vmem:[%s6] sm:$0xff] %v888
  // Predicated region
  $region22: #{bnaf_forward.1} parent=0 // pred_check
    _
  $region23: #{bnaf_forward.1} parent=0 // pred_check_branch
    %892 = sbr.rel (0) target = $region25
  $region24: #{bnaf_forward.1} parent=0 // pred_region
    _
  $region25: #{bnaf_forward.1} parent=0 // pred_fallthru
    _
  // Predicated region
  $region26: #{bnaf_forward.1} parent=0 // pred_check
    _
  $region27: #{bnaf_forward.1} parent=0 // pred_check_branch
    %894 = sbr.rel (0) target = $region29
  $region28: #{bnaf_forward.1} parent=0 // pred_region
    _
  $region29: #{bnaf_forward.1} parent=0 // pred_fallthru
    _
  // Predicated region
  $region30: #{bnaf_forward.1} parent=0 // pred_check
    _
  $region31: #{bnaf_forward.1} parent=0 // pred_check_branch
    %896 = sbr.rel (0) target = $region33
  $region32: #{bnaf_forward.1} parent=0 // pred_region
    _
  $region33: #{bnaf_forward.1} parent=0 // pred_fallthru
    _
  // Predicated region
  $region34: #{bnaf_forward.1} parent=0 // pred_check
    _
  $region35: #{bnaf_forward.1} parent=0 // pred_check_branch
    %898 = sbr.rel (0) target = $region37
  $region36: #{bnaf_forward.1} parent=0 // pred_region
    _
  $region37: #{bnaf_forward.1} parent=0 // pred_fallthru
    _

</llo_original>
